<compile_context>
chip_gen: v7x
topology: tpu7x:2x2x1
jax: 0.10.0
libtpu: 0.0.40
codegen_flags: <defaults>
</compile_context>

<pallas_src>
import jax
import jax.numpy as jnp
import numpy as np
from jax.experimental import pallas as pl
from jax.experimental.pallas import tpu as pltpu


def lr_kernel(xT_ref, w1_ref, b1_ref, w2_ref, b2_ref, w3_ref, b3_ref, o_ref):
    # xT_ref: (dim, tb) — batch on lanes.  No unconditional upcast: bf16 inputs
    # feed the MXU natively; accumulation is forced to f32 below.
    xT = xT_ref[...]

    # Layer 1: (h1, dim) @ (dim, tb) -> (h1, tb), lane-dense.
    h1 = jnp.dot(w1_ref[...], xT, preferred_element_type=jnp.float32)
    h1 = jnp.maximum(h1 + b1_ref[...], 0.0)            # bias bcast over lanes; dropout = id

    # Layer 2: (h2, h1) @ (h1, tb) -> (h2, tb).
    h2 = jnp.dot(w2_ref[...], h1, preferred_element_type=jnp.float32)
    h2 = jnp.maximum(h2 + b2_ref[...], 0.0)            # dropout = id

    # Layer 3: degenerate out_features=1 layer done on VPU (mul) + XLU (sublane
    # reduce) instead of a wasted MXU pass.  w3_ref is the (h2, 1) weight column.
    y = jnp.sum(h2 * w3_ref[...], axis=0, keepdims=True) + b3_ref[0]   # (1, tb)

    o_ref[...] = y.astype(o_ref.dtype)                 # unmasked, 128-lane-dense store


def _pick_tb(B):
    """Largest lane-aligned batch tile; prefer >=2 grid steps (v7x megacore)."""
    if B % 128 == 0:
        tb = min(512, B)
        while tb > 128 and B // tb < 2:
            tb //= 2
        return tb
    return B        # small / odd batches: single full-array block (still legal)


def lr_forward(x, params, *, tb=None):
    """x: (B, dim).  Returns (B,) float32, matching LR.forward (eval mode)."""
    w1, b1, w2, b2, w3, b3 = params
    B, dim = x.shape
    h1, h2 = w1.shape[0], w2.shape[0]

    if tb is None:
        tb = _pick_tb(B)
    assert B % tb == 0, "batch must be divisible by the batch tile"
    assert tb == B or tb % 128 == 0, "tb must be the full batch or a multiple of 128"

    xT = x.T                                  # layout plumbing: batch -> lane axis
    grid = (B // tb,)

    out = pl.pallas_call(
        lr_kernel,
        out_shape=jax.ShapeDtypeStruct((1, B), jnp.float32),
        grid_spec=pltpu.PrefetchScalarGridSpec(
            num_scalar_prefetch=0,
            grid=grid,
            in_specs=[
                pl.BlockSpec((dim, tb), lambda i: (0, i)),    # x^T tile (streamed)
                pl.BlockSpec((h1, dim), lambda i: (0, 0)),    # W1 (full, resident)
                pl.BlockSpec((h1, 1),   lambda i: (0, 0)),    # b1 column
                pl.BlockSpec((h2, h1),  lambda i: (0, 0)),    # W2
                pl.BlockSpec((h2, 1),   lambda i: (0, 0)),    # b2 column
                pl.BlockSpec((h2, 1),   lambda i: (0, 0)),    # w3 column (VPU layer)
                pl.BlockSpec(memory_space=pltpu.MemorySpace.SMEM),  # b3 scalar
            ],
            out_specs=pl.BlockSpec((1, tb), lambda i: (0, i)),  # lane-dense output slab
        ),
        compiler_params=pltpu.CompilerParams(
            dimension_semantics=("parallel",)),
    )(xT, w1, b1, w2, b2, w3, b3)

    return out.reshape(B)                     # (1, B) -> (B,): squeeze(dim=1)


def init_lr_params(key, dim, dtype=jnp.float32):
    """Mimics torch.nn.Linear default init, stored in kernel-friendly layout:
       W1: (dim//2, dim), W2: (dim//4, dim//2)  -- native PyTorch (out, in)
       w3: (dim//4, 1)                          -- PyTorch (1, dim//4) transposed
       b1/b2: (out, 1) columns, b3: (1,) scalar."""
    sizes = [(dim // 2, dim), (dim // 4, dim // 2), (1, dim // 4)]
    flat = []
    for (fan_out, fan_in) in sizes:
        key, kw, kb = jax.random.split(key, 3)
        bound = 1.0 / np.sqrt(fan_in)
        w = jax.random.uniform(kw, (fan_out, fan_in), jnp.float32, -bound, bound)
        b = jax.random.uniform(kb, (fan_out,), jnp.float32, -bound, bound)
        flat += [w, b]
    w1, b1, w2, b2, w3t, b3 = flat
    return (w1.astype(dtype), b1[:, None].astype(dtype),
            w2.astype(dtype), b2[:, None].astype(dtype),
            w3t.T.astype(dtype),                 # (1, h2) -> (h2, 1) column
            b3.astype(jnp.float32))              # (1,) scalar, lives in SMEM


def lr_reference(x, params):
    """Pure-JAX reference of the PyTorch forward (eval mode)."""
    w1, b1, w2, b2, w3, b3 = params
    h = jnp.maximum(x @ w1.T + b1[:, 0], 0.0)
    h = jnp.maximum(h @ w2.T + b2[:, 0], 0.0)
    return h @ w3[:, 0] + b3[0]


if __name__ == "__main__":
    key = jax.random.PRNGKey(0)
    dim = 32             # -> hidden sizes 16, 8, 1
    batch = 256          # lane-aligned; tiles into 2 x 128-row grid steps

    kx, kp = jax.random.split(key)
    x = jax.random.normal(kx, (batch, dim), jnp.float32)
    params = init_lr_params(kp, dim)

    y = lr_forward(x, params)
    y = jax.block_until_ready(y)

    y_ref = lr_reference(x, params)
    np.testing.assert_allclose(np.asarray(y), np.asarray(y_ref),
                               rtol=1e-5, atol=1e-5)
    assert y.shape == (batch,)
    print("KERNEL_OK")
</pallas_src>

<mosaic_0001>
module attributes {stable_mosaic.version = 11 : i64} {
  func.func @lr_kernel(%arg0: i32, %arg1: memref<32x128xf32, #tpu.memory_space<vmem>>, %arg2: memref<16x32xf32, #tpu.memory_space<vmem>>, %arg3: memref<16x1xf32, #tpu.memory_space<vmem>>, %arg4: memref<8x16xf32, #tpu.memory_space<vmem>>, %arg5: memref<8x1xf32, #tpu.memory_space<vmem>>, %arg6: memref<8x1xf32, #tpu.memory_space<vmem>>, %arg7: memref<1xf32, #tpu.memory_space<smem>>, %arg8: memref<1x128xf32, #tpu.memory_space<vmem>>) attributes {dimension_semantics = [#tpu.dimension_semantics<parallel>], iteration_bounds = array<i64: 2>, scalar_prefetch = 0 : i64, scratch_operands = 0 : i64, tpu.core_type = #tpu.core_type<tc>, window_params = [{transform_indices = @transform_0, window_bounds = array<i64: 32, 128>}, {pipeline_mode = #tpu.pipeline_mode<synchronous>, transform_indices = @transform_1, window_bounds = array<i64: 16, 32>}, {pipeline_mode = #tpu.pipeline_mode<synchronous>, transform_indices = @transform_2, window_bounds = array<i64: 16, 1>}, {pipeline_mode = #tpu.pipeline_mode<synchronous>, transform_indices = @transform_3, window_bounds = array<i64: 8, 16>}, {pipeline_mode = #tpu.pipeline_mode<synchronous>, transform_indices = @transform_4, window_bounds = array<i64: 8, 1>}, {pipeline_mode = #tpu.pipeline_mode<synchronous>, transform_indices = @transform_5, window_bounds = array<i64: 8, 1>}, {transform_indices = @transform_6, window_bounds = array<i64: 1>}, {transform_indices = @transform_7, window_bounds = array<i64: 1, 128>}]} {
    %c0 = arith.constant 0 : index
    %c0_0 = arith.constant 0 : index
    %0 = vector.load %arg1[%c0, %c0_0] : memref<32x128xf32, #tpu.memory_space<vmem>>, vector<32x128xf32>
    %c0_1 = arith.constant 0 : index
    %c0_2 = arith.constant 0 : index
    %1 = vector.load %arg2[%c0_1, %c0_2] : memref<16x32xf32, #tpu.memory_space<vmem>>, vector<16x32xf32>
    %cst = arith.constant dense<0.000000e+00> : vector<16x128xf32>
    %2 = tpu.matmul %1, %0, %cst {dimension_numbers = #tpu.dot_dimension_numbers<[1], [0], [0], [1], [0, 0, 1, 1], [], []>} : vector<16x32xf32>, vector<32x128xf32>, vector<16x128xf32> -> vector<16x128xf32>
    %c0_3 = arith.constant 0 : index
    %c0_4 = arith.constant 0 : index
    %3 = vector.load %arg3[%c0_3, %c0_4] : memref<16x1xf32, #tpu.memory_space<vmem>>, vector<16x1xf32>
    %4 = vector.broadcast %3 : vector<16x1xf32> to vector<16x128xf32>
    %5 = arith.addf %2, %4 : vector<16x128xf32>
    %cst_5 = arith.constant 0.000000e+00 : f32
    %6 = vector.broadcast %cst_5 : f32 to vector<16x128xf32>
    %7 = arith.maximumf %5, %6 : vector<16x128xf32>
    %c0_6 = arith.constant 0 : index
    %c0_7 = arith.constant 0 : index
    %8 = vector.load %arg4[%c0_6, %c0_7] : memref<8x16xf32, #tpu.memory_space<vmem>>, vector<8x16xf32>
    %cst_8 = arith.constant dense<0.000000e+00> : vector<8x128xf32>
    %9 = tpu.matmul %8, %7, %cst_8 {dimension_numbers = #tpu.dot_dimension_numbers<[1], [0], [0], [1], [0, 0, 1, 1], [], []>} : vector<8x16xf32>, vector<16x128xf32>, vector<8x128xf32> -> vector<8x128xf32>
    %c0_9 = arith.constant 0 : index
    %c0_10 = arith.constant 0 : index
    %10 = vector.load %arg5[%c0_9, %c0_10] : memref<8x1xf32, #tpu.memory_space<vmem>>, vector<8x1xf32>
    %11 = vector.broadcast %10 : vector<8x1xf32> to vector<8x128xf32>
    %12 = arith.addf %9, %11 : vector<8x128xf32>
    %cst_11 = arith.constant 0.000000e+00 : f32
    %13 = vector.broadcast %cst_11 : f32 to vector<8x128xf32>
    %14 = arith.maximumf %12, %13 : vector<8x128xf32>
    %c0_12 = arith.constant 0 : index
    %c0_13 = arith.constant 0 : index
    %15 = vector.load %arg6[%c0_12, %c0_13] : memref<8x1xf32, #tpu.memory_space<vmem>>, vector<8x1xf32>
    %16 = vector.broadcast %15 : vector<8x1xf32> to vector<8x128xf32>
    %17 = arith.mulf %14, %16 : vector<8x128xf32>
    %cst_14 = arith.constant dense<0.000000e+00> : vector<128xf32>
    %18 = vector.multi_reduction <add>, %17, %cst_14 [0] : vector<8x128xf32> to vector<128xf32>
    %19 = vector.shape_cast %18 : vector<128xf32> to vector<1x128xf32>
    %c0_15 = arith.constant 0 : index
    %20 = memref.load %arg7[%c0_15] : memref<1xf32, #tpu.memory_space<smem>>
    %21 = vector.broadcast %20 : f32 to vector<1x128xf32>
    %22 = arith.addf %19, %21 : vector<1x128xf32>
    %c0_16 = arith.constant 0 : index
    %c0_17 = arith.constant 0 : index
    %23 = vector.load %arg8[%c0_16, %c0_17] : memref<1x128xf32, #tpu.memory_space<vmem>>, vector<1x128xf32>
    tpu.vector_store %arg8[%c0_16, %c0_17], %22 {strides = array<i32>} : memref<1x128xf32, #tpu.memory_space<vmem>>, vector<1x128xf32>,
    return
  }
  func.func @transform_0(%arg0: i32) -> (i32, i32) {
    %c0_i32 = arith.constant 0 : i32
    %c0_i32_0 = arith.constant 0 : i32
    return %c0_i32, %arg0 : i32, i32
  }
  func.func @transform_1(%arg0: i32) -> (i32, i32) {
    %c0_i32 = arith.constant 0 : i32
    %c0_i32_0 = arith.constant 0 : i32
    %c0_i32_1 = arith.constant 0 : i32
    return %c0_i32, %c0_i32_0 : i32, i32
  }
  func.func @transform_2(%arg0: i32) -> (i32, i32) {
    %c0_i32 = arith.constant 0 : i32
    %c0_i32_0 = arith.constant 0 : i32
    %c0_i32_1 = arith.constant 0 : i32
    return %c0_i32, %c0_i32_0 : i32, i32
  }
  func.func @transform_3(%arg0: i32) -> (i32, i32) {
    %c0_i32 = arith.constant 0 : i32
    %c0_i32_0 = arith.constant 0 : i32
    %c0_i32_1 = arith.constant 0 : i32
    return %c0_i32, %c0_i32_0 : i32, i32
  }
  func.func @transform_4(%arg0: i32) -> (i32, i32) {
    %c0_i32 = arith.constant 0 : i32
    %c0_i32_0 = arith.constant 0 : i32
    %c0_i32_1 = arith.constant 0 : i32
    return %c0_i32, %c0_i32_0 : i32, i32
  }
  func.func @transform_5(%arg0: i32) -> (i32, i32) {
    %c0_i32 = arith.constant 0 : i32
    %c0_i32_0 = arith.constant 0 : i32
    %c0_i32_1 = arith.constant 0 : i32
    return %c0_i32, %c0_i32_0 : i32, i32
  }
  func.func @transform_6(%arg0: i32) -> i32 {
    %c0_i32 = arith.constant 0 : i32
    %c0_i32_0 = arith.constant 0 : i32
    return %c0_i32 : i32
  }
  func.func @transform_7(%arg0: i32) -> (i32, i32) {
    %c0_i32 = arith.constant 0 : i32
    %c0_i32_0 = arith.constant 0 : i32
    return %c0_i32, %arg0 : i32, i32
  }
}

</mosaic_0001>

<llo_original>
// kernel: tpu_custom_call.1
$region0: #{tpu_custom_call.1}
  #allocation0 [shape = 'u32[]', space=smem, size = 0x4, offset = 0x4, fixed_abs, tag = 'smem constant byte address 0x4 - core index']
  #allocation1 [shape = 'u32[144,128]{1,0:T(1,128)}', space=vmem, size = 0x12000, scoped, tag = 'internal scratch']
  #allocation2 [shape = 'f32[1]{0:T(128)S(6)}', space=smem, size = 0x200, scoped, tag = 'scoped memory for tpu_custom_call.1']
  %s0 = inlined_call_operand.hbm [shape: f32[32,256], index: 0, kind: input, shape index: {}]
  %s1 = inlined_call_operand.vmem [shape: f32[16,32], index: 1, kind: input, shape index: {}]
  %s2 = inlined_call_operand.vmem [shape: f32[16,1], index: 2, kind: input, shape index: {}]
  %s3 = inlined_call_operand.vmem [shape: f32[8,16], index: 3, kind: input, shape index: {}]
  %s4 = inlined_call_operand.vmem [shape: f32[8,1], index: 4, kind: input, shape index: {}]
  %s5 = inlined_call_operand.vmem [shape: f32[8,1], index: 5, kind: input, shape index: {}]
  %s6 = inlined_call_operand.<no memory space> [shape: f32[1], index: 6, kind: input, shape index: {}]
  %s7 = inlined_call_operand.hbm [shape: f32[1,256], index: 7, kind: output, shape index: {}]
  %s8 = sld [smem:[#allocation0]]
  $region65: #{tpu_custom_call.1} parent=0
    _
  %s10 = ssub.s32 1, %s8
  %s11 = scalar_select 0, %s10, %s8
  %12 = sst [smem:[#allocation2]] %s6
  $region1: #{tpu_custom_call.1} parent=0
    #allocation3 [shape = 'u8[32768]{0}', space=vmem, size = 0x8000, scoped, tag = 'input window, operand 0']
    #allocation4 [shape = 's32[2]{0}', space=sflag, size = 0x8, scoped, tag = 'scoped memory for tpu_custom_call.1']
    #allocation5 [shape = 's32[2]{0}', space=sflag, size = 0x8, scoped, tag = 'scoped memory for tpu_custom_call.1']
    #allocation6 [shape = 'u8[1024]{0}', space=vmem, size = 0x400, scoped, tag = 'output window, operand 0']
    %13 = vsyncpa [#allocation4], 0
    %s14 = scalar_lea.sflag [#allocation4], 1
    %15 = vsyncpa %s14, 0
    %16 = vsyncpa [#allocation5], 0
    %s17 = scalar_lea.sflag [#allocation5], 1
    %18 = vsyncpa %s17, 0
    loop: start=0, step=1, limit=4
    $region2: #{tpu_custom_call.1} parent=1 // loop_pre_header
      _
    $region3: #{tpu_custom_call.1} parent=1 // loop_header
      %s20 = sphi 0, %s24
      %p21 = scmp.ge.s32.totalorder %s20, 4
      %s30 = sphi 0, %s32
      %s33 = sphi 0, %s30
      %s34 = sphi 0, %s33
      %s50 = sphi 0, %s34
      %s54 = sphi 0, %s54
      %s56 = sphi 0, %s54
      %s57 = sphi 0, %s56
      %s71 = sphi 0, %s57
      %s75 = sphi 0, %s75
      %s77 = sphi 0, %s75
      %s78 = sphi 0, %s77
      %s92 = sphi 0, %s78
      %s96 = sphi 0, %s96
      %s98 = sphi 0, %s96
      %s99 = sphi 0, %s98
      %s113 = sphi 0, %s99
      %s117 = sphi 0, %s117
      %s119 = sphi 0, %s117
      %s120 = sphi 0, %s119
      %s134 = sphi 0, %s120
      %s138 = sphi 0, %s138
      %s140 = sphi 0, %s138
      %s141 = sphi 0, %s140
      %s155 = sphi 0, %s141
      %s159 = sphi 0, %s159
      %s161 = sphi 0, %s159
      %s162 = sphi 0, %s161
      %s176 = sphi 0, %s162
      %s182 = sphi 0, %s184
      %s185 = sphi 0, %s182
      %s186 = sphi 0, %s185
      %s202 = sphi 0, %s186
    $region4: #{tpu_custom_call.1} parent=1 // loop_header_branch
      %23 = sbr.rel (%p21) target = $region8
    $region5: #{tpu_custom_call.1} parent=1 // loop_body
      %s25 = ssub.s32 %s20, 1
      %s26 = ssub.s32 %s20, 2
      %s27 = sadd.s32 %s20, 1
      %s28 = ssub.s32 %s20, %s27
      %p29 = scmp.eq.s32.totalorder %s28, 0
      %s31 = sadd.s32 %s30, 1
      %s32 = scalar_select %p29, %s30, %s31
      %p35 = pneg %p29
      %p36 = scmp.eq.s32.totalorder %s20, 1
      %p37 = por %p35, %p36
      %p38 = scmp.ne.s32.totalorder %s30, %s33
      %p39 = scmp.eq.s32.totalorder %s20, 0
      %p40 = por %p38, %p39
      %p41 = scmp.ne.s32.totalorder %s30, %s33
      %p42 = scmp.eq.s32.totalorder %s25, 1
      %p43 = por %p41, %p42
      %p44 = scmp.ne.s32.totalorder %s33, %s34
      %p45 = scmp.eq.s32.totalorder %s25, 0
      %p46 = por %p44, %p45
      %p47 = scmp.ne.s32.totalorder %s33, %s34
      %p48 = scmp.eq.s32.totalorder %s26, 1
      %p49 = por %p47, %p48
      %p51 = scmp.ne.s32.totalorder %s34, %s50
      %p52 = scmp.eq.s32.totalorder %s26, 0
      %p53 = por %p51, %p52
      %s55 = sadd.s32 %s54, 1
      %p58 = scmp.eq.s32.totalorder %s20, 1
      %p59 = scmp.ne.s32.totalorder %s54, %s56
      %p60 = scmp.eq.s32.totalorder %s20, 0
      %p61 = por %p59, %p60
      %p62 = scmp.ne.s32.totalorder %s54, %s56
      %p63 = scmp.eq.s32.totalorder %s25, 1
      %p64 = por %p62, %p63
      %p65 = scmp.ne.s32.totalorder %s56, %s57
      %p66 = scmp.eq.s32.totalorder %s25, 0
      %p67 = por %p65, %p66
      %p68 = scmp.ne.s32.totalorder %s56, %s57
      %p69 = scmp.eq.s32.totalorder %s26, 1
      %p70 = por %p68, %p69
      %p72 = scmp.ne.s32.totalorder %s57, %s71
      %p73 = scmp.eq.s32.totalorder %s26, 0
      %p74 = por %p72, %p73
      %s76 = sadd.s32 %s75, 1
      %p79 = scmp.eq.s32.totalorder %s20, 1
      %p80 = scmp.ne.s32.totalorder %s75, %s77
      %p81 = scmp.eq.s32.totalorder %s20, 0
      %p82 = por %p80, %p81
      %p83 = scmp.ne.s32.totalorder %s75, %s77
      %p84 = scmp.eq.s32.totalorder %s25, 1
      %p85 = por %p83, %p84
      %p86 = scmp.ne.s32.totalorder %s77, %s78
      %p87 = scmp.eq.s32.totalorder %s25, 0
      %p88 = por %p86, %p87
      %p89 = scmp.ne.s32.totalorder %s77, %s78
      %p90 = scmp.eq.s32.totalorder %s26, 1
      %p91 = por %p89, %p90
      %p93 = scmp.ne.s32.totalorder %s78, %s92
      %p94 = scmp.eq.s32.totalorder %s26, 0
      %p95 = por %p93, %p94
      %s97 = sadd.s32 %s96, 1
      %p100 = scmp.eq.s32.totalorder %s20, 1
      %p101 = scmp.ne.s32.totalorder %s96, %s98
      %p102 = scmp.eq.s32.totalorder %s20, 0
      %p103 = por %p101, %p102
      %p104 = scmp.ne.s32.totalorder %s96, %s98
      %p105 = scmp.eq.s32.totalorder %s25, 1
      %p106 = por %p104, %p105
      %p107 = scmp.ne.s32.totalorder %s98, %s99
      %p108 = scmp.eq.s32.totalorder %s25, 0
      %p109 = por %p107, %p108
      %p110 = scmp.ne.s32.totalorder %s98, %s99
      %p111 = scmp.eq.s32.totalorder %s26, 1
      %p112 = por %p110, %p111
      %p114 = scmp.ne.s32.totalorder %s99, %s113
      %p115 = scmp.eq.s32.totalorder %s26, 0
      %p116 = por %p114, %p115
      %s118 = sadd.s32 %s117, 1
      %p121 = scmp.eq.s32.totalorder %s20, 1
      %p122 = scmp.ne.s32.totalorder %s117, %s119
      %p123 = scmp.eq.s32.totalorder %s20, 0
      %p124 = por %p122, %p123
      %p125 = scmp.ne.s32.totalorder %s117, %s119
      %p126 = scmp.eq.s32.totalorder %s25, 1
      %p127 = por %p125, %p126
      %p128 = scmp.ne.s32.totalorder %s119, %s120
      %p129 = scmp.eq.s32.totalorder %s25, 0
      %p130 = por %p128, %p129
      %p131 = scmp.ne.s32.totalorder %s119, %s120
      %p132 = scmp.eq.s32.totalorder %s26, 1
      %p133 = por %p131, %p132
      %p135 = scmp.ne.s32.totalorder %s120, %s134
      %p136 = scmp.eq.s32.totalorder %s26, 0
      %p137 = por %p135, %p136
      %s139 = sadd.s32 %s138, 1
      %p142 = scmp.eq.s32.totalorder %s20, 1
      %p143 = scmp.ne.s32.totalorder %s138, %s140
      %p144 = scmp.eq.s32.totalorder %s20, 0
      %p145 = por %p143, %p144
      %p146 = scmp.ne.s32.totalorder %s138, %s140
      %p147 = scmp.eq.s32.totalorder %s25, 1
      %p148 = por %p146, %p147
      %p149 = scmp.ne.s32.totalorder %s140, %s141
      %p150 = scmp.eq.s32.totalorder %s25, 0
      %p151 = por %p149, %p150
      %p152 = scmp.ne.s32.totalorder %s140, %s141
      %p153 = scmp.eq.s32.totalorder %s26, 1
      %p154 = por %p152, %p153
      %p156 = scmp.ne.s32.totalorder %s141, %s155
      %p157 = scmp.eq.s32.totalorder %s26, 0
      %p158 = por %p156, %p157
      %s160 = sadd.s32 %s159, 1
      %p163 = scmp.eq.s32.totalorder %s20, 1
      %p164 = scmp.ne.s32.totalorder %s159, %s161
      %p165 = scmp.eq.s32.totalorder %s20, 0
      %p166 = por %p164, %p165
      %p167 = scmp.ne.s32.totalorder %s159, %s161
      %p168 = scmp.eq.s32.totalorder %s25, 1
      %p169 = por %p167, %p168
      %p170 = scmp.ne.s32.totalorder %s161, %s162
      %p171 = scmp.eq.s32.totalorder %s25, 0
      %p172 = por %p170, %p171
      %p173 = scmp.ne.s32.totalorder %s161, %s162
      %p174 = scmp.eq.s32.totalorder %s26, 1
      %p175 = por %p173, %p174
      %p177 = scmp.ne.s32.totalorder %s162, %s176
      %p178 = scmp.eq.s32.totalorder %s26, 0
      %p179 = por %p177, %p178
      %s180 = ssub.s32 %s20, %s27
      %p181 = scmp.eq.s32.totalorder %s180, 0
      %s183 = sadd.s32 %s182, 1
      %s184 = scalar_select %p181, %s182, %s183
      %p187 = pneg %p181
      %p188 = scmp.eq.s32.totalorder %s20, 1
      %p189 = por %p187, %p188
      %p190 = scmp.ne.s32.totalorder %s182, %s185
      %p191 = scmp.eq.s32.totalorder %s20, 0
      %p192 = por %p190, %p191
      %p193 = scmp.ne.s32.totalorder %s182, %s185
      %p194 = scmp.eq.s32.totalorder %s25, 1
      %p195 = por %p193, %p194
      %p196 = scmp.ne.s32.totalorder %s185, %s186
      %p197 = scmp.eq.s32.totalorder %s25, 0
      %p198 = por %p196, %p197
      %p199 = scmp.ne.s32.totalorder %s185, %s186
      %p200 = scmp.eq.s32.totalorder %s26, 1
      %p201 = por %p199, %p200
      %p203 = scmp.ne.s32.totalorder %s186, %s202
      %p204 = scmp.eq.s32.totalorder %s26, 0
      %p205 = por %p203, %p204
      %p206 = scmp.le.s32.totalorder 1, %s20
      %p207 = scmp.lt.s32.totalorder %s20, 3
      %p208 = pnand %p206, %p207
      %p209 = pneg %p208
      // Predicated region
      $region9: #{tpu_custom_call.1} parent=5 // pred_check
        _
      $region10: #{tpu_custom_call.1} parent=5 // pred_check_branch
        %211 = sbr.rel (%p208) target = $region12
      $region11: #{tpu_custom_call.1} parent=5 // pred_region
        %s212 = ssub.s32 %s20, 1
        // Predicated region
        $region13: #{tpu_custom_call.1} parent=11 // pred_check
          %p213 = pneg %p67
        $region14: #{tpu_custom_call.1} parent=11 // pred_check_branch
          %215 = sbr.rel (%p213) target = $region16
        $region15: #{tpu_custom_call.1} parent=11 // pred_region
          _
        $region16: #{tpu_custom_call.1} parent=11 // pred_fallthru
          _
        // Predicated region
        $region17: #{tpu_custom_call.1} parent=11 // pred_check
          %p216 = pneg %p88
        $region18: #{tpu_custom_call.1} parent=11 // pred_check_branch
          %218 = sbr.rel (%p216) target = $region20
        $region19: #{tpu_custom_call.1} parent=11 // pred_region
          _
        $region20: #{tpu_custom_call.1} parent=11 // pred_fallthru
          _
        // Predicated region
        $region21: #{tpu_custom_call.1} parent=11 // pred_check
          %p219 = pneg %p109
        $region22: #{tpu_custom_call.1} parent=11 // pred_check_branch
          %221 = sbr.rel (%p219) target = $region24
        $region23: #{tpu_custom_call.1} parent=11 // pred_region
          _
        $region24: #{tpu_custom_call.1} parent=11 // pred_fallthru
          _
        // Predicated region
        $region25: #{tpu_custom_call.1} parent=11 // pred_check
          %p222 = pneg %p130
        $region26: #{tpu_custom_call.1} parent=11 // pred_check_branch
          %224 = sbr.rel (%p222) target = $region28
        $region27: #{tpu_custom_call.1} parent=11 // pred_region
          _
        $region28: #{tpu_custom_call.1} parent=11 // pred_fallthru
          _
        // Predicated region
        $region29: #{tpu_custom_call.1} parent=11 // pred_check
          %p225 = pneg %p151
        $region30: #{tpu_custom_call.1} parent=11 // pred_check_branch
          %227 = sbr.rel (%p225) target = $region32
        $region31: #{tpu_custom_call.1} parent=11 // pred_region
          _
        $region32: #{tpu_custom_call.1} parent=11 // pred_fallthru
          _
        // Predicated region
        $region33: #{tpu_custom_call.1} parent=11 // pred_check
          %p228 = pneg %p172
        $region34: #{tpu_custom_call.1} parent=11 // pred_check_branch
          %230 = sbr.rel (%p228) target = $region36
        $region35: #{tpu_custom_call.1} parent=11 // pred_region
          _
        $region36: #{tpu_custom_call.1} parent=11 // pred_fallthru
          _
      $region12: #{tpu_custom_call.1} parent=5 // pred_fallthru
        _
      %p231 = scmp.lt.s32.totalorder %s20, 2
      // Predicated region
      $region37: #{tpu_custom_call.1} parent=5 // pred_check
        %p232 = pneg %p231
      $region38: #{tpu_custom_call.1} parent=5 // pred_check_branch
        %234 = sbr.rel (%p232) target = $region40
      $region39: #{tpu_custom_call.1} parent=5 // pred_region
        // Predicated region
        $region41: #{tpu_custom_call.1} parent=39 // pred_check
          %p235 = pneg %p40
        $region42: #{tpu_custom_call.1} parent=39 // pred_check_branch
          %237 = sbr.rel (%p235) target = $region44
        $region43: #{tpu_custom_call.1} parent=39 // pred_region
          %s238 = sand.u32 %s30, 1
          %s239 = scalar_lea.sflag [#allocation4], %s238
          %s240 = sand.u32 %s30, 1
          %s241 = smul.addr %s240, 32
          %s242 = scalar_lea.vmem [#allocation3], %s241
          %s244 = ssub.s32 512, 512
          %245 = vsyncadd %s239, %s244
          %s246 = smul.addr %s20, 128
          %s247 = scalar_lea.hbm %s0, %s246
          %s248 = sshll.u32 %s242, 4
          %s249 = int_to_ptr.vmem [resolvable:$true] %s248
          %254 = dma.hbm_to_vmem [thread:$0]  %s247, 512, %s249, %s239, 256, 128, 8
        $region44: #{tpu_custom_call.1} parent=39 // pred_fallthru
          _
      $region40: #{tpu_custom_call.1} parent=5 // pred_fallthru
        _
      %p255 = scmp.le.s32.totalorder 1, %s20
      %p256 = scmp.lt.s32.totalorder %s20, 3
      %p257 = pnand %p255, %p256
      %p258 = pneg %p257
      // Predicated region
      $region45: #{tpu_custom_call.1} parent=5 // pred_check
        _
      $region46: #{tpu_custom_call.1} parent=5 // pred_check_branch
        %260 = sbr.rel (%p257) target = $region48
      $region47: #{tpu_custom_call.1} parent=5 // pred_region
        %s261 = ssub.s32 %s20, 1
        %s262 = sand.u32 %s33, 1
        %s263 = scalar_lea.sflag [#allocation4], %s262
        %s264 = sand.u32 %s33, 1
        %s265 = smul.addr %s264, 32
        %s266 = scalar_lea.vmem [#allocation3], %s265
        // Predicated region
        $region49: #{tpu_custom_call.1} parent=47 // pred_check
          %p267 = pneg %p46
        $region50: #{tpu_custom_call.1} parent=47 // pred_check_branch
          %269 = sbr.rel (%p267) target = $region52
        $region51: #{tpu_custom_call.1} parent=47 // pred_region
          %270 = dma.done %s263, 512
        $region52: #{tpu_custom_call.1} parent=47 // pred_fallthru
          _
        %s271 = sand.u32 %s33, 1
        %s272 = scalar_lea.sflag [#allocation4], %s271
        %s273 = sand.u32 %s33, 1
        %s274 = smul.addr %s273, 32
        %s275 = scalar_lea.vmem [#allocation3], %s274
        %p276 = pneg %p46
        %p277 = pneg %p43
        %p278 = pneg %p67
        %p279 = pneg %p64
        %p280 = pneg %p88
        %p281 = pneg %p85
        %p282 = pneg %p109
        %p283 = pneg %p106
        %p284 = pneg %p130
        %p285 = pneg %p127
        %p286 = pneg %p151
        %p287 = pneg %p148
        %p288 = pneg %p172
        %p289 = pneg %p169
        %p290 = pneg %p198
        %p291 = pneg %p195
        %s292 = sand.u32 %s185, 1
        %s293 = scalar_lea.sflag [#allocation5], %s292
        %s294 = sand.u32 %s185, 1
        %s295 = scalar_lea.vmem [#allocation6], %s294
        %v296 = vld [vmem:[%s266] sm:$0xff]
        %v297 = vld [vmem:[%s266 + $0x8] sm:$0xff]
        %v298 = vld [vmem:[%s266 + $0x10] sm:$0xff]
        %v299 = vld [vmem:[%s266 + $0x18] sm:$0xff]
        %v300 = vld [vmem:[%s1] sm:$0xff]
        %v301 = vld [vmem:[%s1 + $0x8] sm:$0xff]
        %v302 = vld [vmem:[%s2] sm:$0xff]
        %v303 = vld [vmem:[%s2 + $0x8] sm:$0xff]
        %305 = vset.pattern.permute.xlu0 0
        %306 = vperm.xlu0 %305, %v302
        %v307 = vpop.permute.xlu0 %306
        %310 = vset.pattern.permute.xlu0 0
        %311 = vperm.xlu0 %310, %v303
        %v312 = vpop.permute.xlu0 %311
        %vm314 = vcmask 261120
        %v316 = vsel %vm314, %v300, 0
        %v319 = vsel %vm314, %v301, 0
        %321 = vmatprep.subr.mxu0 0.0
        %322 = vmatpush1.msra.mxu0 %v296
        %323 = vmatprep.subr.mxu0 0.0
        %324 = vmatpush1.msra.mxu0 %v297
        %325 = vmatprep.subr.mxu0 0.0
        %326 = vmatpush1.msra.mxu0 %v298
        %327 = vmatprep.subr.mxu0 0.0
        %328 = vmatpush1.msra.mxu0 %v299
        %329 = vmatprep.subr.mxu0 0.0
        %330 = vmatpush1.msra.mxu0 0.0
        %331 = vmatprep.subr.mxu0 0.0
        %332 = vmatpush1.msra.mxu0 0.0
        %333 = vmatprep.subr.mxu0 0.0
        %334 = vmatpush1.msra.mxu0 0.0
        %335 = vmatprep.subr.mxu0 0.0
        %336 = vmatpush1.msra.mxu0 0.0
        %337 = vmatprep.subr.mxu0 0.0
        %338 = vmatpush1.msra.mxu0 0.0
        %339 = vmatprep.subr.mxu0 0.0
        %340 = vmatpush1.msra.mxu0 0.0
        %341 = vmatprep.subr.mxu0 0.0
        %342 = vmatpush1.msra.mxu0 0.0
        %343 = vmatprep.subr.mxu0 0.0
        %344 = vmatpush1.msra.mxu0 0.0
        %345 = vmatprep.subr.mxu0 0.0
        %346 = vmatpush1.msra.mxu0 0.0
        %347 = vmatprep.subr.mxu0 0.0
        %348 = vmatpush1.msra.mxu0 0.0
        %349 = vmatprep.subr.mxu0 0.0
        %350 = vmatpush1.msra.mxu0 0.0
        %351 = vmatprep.subr.mxu0 0.0
        %352 = vmatpush1.msra.mxu0 0.0
        %353 = vmatprep.subr.mxu0 0.0
        %354 = vmatpush1.msra.mxu0 0.0
        %355 = vmatprep.subr.mxu0 0.0
        %356 = vmatpush1.msra.mxu0 0.0
        %357 = vmatprep.subr.mxu0 0.0
        %358 = vmatpush1.msra.mxu0 0.0
        %359 = vmatprep.subr.mxu0 0.0
        %360 = vmatpush1.msra.mxu0 0.0
        %361 = vmatprep.subr.mxu0 0.0
        %362 = vmatpush1.msra.mxu0 0.0
        %363 = vmatprep.subr.mxu0 0.0
        %364 = vmatpush1.msra.mxu0 0.0
        %365 = vmatprep.subr.mxu0 0.0
        %366 = vmatpush1.msra.mxu0 0.0
        %367 = vmatprep.subr.mxu0 0.0
        %368 = vmatpush1.msra.mxu0 0.0
        %369 = vmatprep.subr.mxu0 0.0
        %370 = vmatpush1.msra.mxu0 0.0
        %371 = vmatprep.subr.mxu0 0.0
        %372 = vmatpush1.msra.mxu0 0.0
        %373 = vmatprep.subr.mxu0 0.0
        %374 = vmatpush1.msra.mxu0 0.0
        %375 = vmatprep.subr.mxu0 0.0
        %376 = vmatpush1.msra.mxu0 0.0
        %377 = vmatprep.subr.mxu0 0.0
        %378 = vmatpush1.msra.mxu0 0.0
        %379 = vmatprep.subr.mxu0 0.0
        %380 = vmatpush1.msra.mxu0 0.0
        %381 = vmatprep.subr.mxu0 0.0
        %382 = vmatpush1.msra.mxu0 0.0
        %383 = vmatprep.subr.mxu0 0.0
        %384 = vmatpush1.msra.mxu0 0.0
        %385 = vmatprep.mubr.f32.mxu0 0.0
        %386 = vmatmul.mubr.f32.gmra.mrb[0].mxu0 %v316
        %v387 = vpop.f32.mrb[0].mxu0
        %v388 = vadd.f32 %v307, %v387
        %v389 = vpop.f32.mrb[0].mxu0
        %390 = vmatprep.mubr.f32.mxu0 0.0
        %391 = vmatmul.mubr.f32.gmra.mrb[0].mxu0 %v319
        %v392 = vpop.f32.mrb[0].mxu0
        %v393 = vadd.f32 %v312, %v392
        %v394 = vpop.f32.mrb[0].mxu0
        %395 = vdwg.mxu0
        %v396 = vmax.f32 %v388, 0.0
        %v397 = vmax.f32 %v393, 0.0
        %v398 = vld [vmem:[%s3] sm:$0xff]
        %v399 = vld [vmem:[%s4] sm:$0xff]
        %401 = vset.pattern.permute.xlu0 0
        %402 = vperm.xlu0 %401, %v399
        %v403 = vpop.permute.xlu0 %402
        %vm405 = vcmask 130048
        %v407 = vsel %vm405, %v398, 0
        %409 = vmatprep.subr.mxu0 0.0
        %410 = vmatpush1.msra.mxu0 %v396
        %411 = vmatprep.subr.mxu0 0.0
        %412 = vmatpush1.msra.mxu0 %v397
        %413 = vmatprep.subr.mxu0 0.0
        %414 = vmatpush1.msra.mxu0 0.0
        %415 = vmatprep.subr.mxu0 0.0
        %416 = vmatpush1.msra.mxu0 0.0
        %417 = vmatprep.subr.mxu0 0.0
        %418 = vmatpush1.msra.mxu0 0.0
        %419 = vmatprep.subr.mxu0 0.0
        %420 = vmatpush1.msra.mxu0 0.0
        %421 = vmatprep.subr.mxu0 0.0
        %422 = vmatpush1.msra.mxu0 0.0
        %423 = vmatprep.subr.mxu0 0.0
        %424 = vmatpush1.msra.mxu0 0.0
        %425 = vmatprep.subr.mxu0 0.0
        %426 = vmatpush1.msra.mxu0 0.0
        %427 = vmatprep.subr.mxu0 0.0
        %428 = vmatpush1.msra.mxu0 0.0
        %429 = vmatprep.subr.mxu0 0.0
        %430 = vmatpush1.msra.mxu0 0.0
        %431 = vmatprep.subr.mxu0 0.0
        %432 = vmatpush1.msra.mxu0 0.0
        %433 = vmatprep.subr.mxu0 0.0
        %434 = vmatpush1.msra.mxu0 0.0
        %435 = vmatprep.subr.mxu0 0.0
        %436 = vmatpush1.msra.mxu0 0.0
        %437 = vmatprep.subr.mxu0 0.0
        %438 = vmatpush1.msra.mxu0 0.0
        %439 = vmatprep.subr.mxu0 0.0
        %440 = vmatpush1.msra.mxu0 0.0
        %441 = vmatprep.subr.mxu0 0.0
        %442 = vmatpush1.msra.mxu0 0.0
        %443 = vmatprep.subr.mxu0 0.0
        %444 = vmatpush1.msra.mxu0 0.0
        %445 = vmatprep.subr.mxu0 0.0
        %446 = vmatpush1.msra.mxu0 0.0
        %447 = vmatprep.subr.mxu0 0.0
        %448 = vmatpush1.msra.mxu0 0.0
        %449 = vmatprep.subr.mxu0 0.0
        %450 = vmatpush1.msra.mxu0 0.0
        %451 = vmatprep.subr.mxu0 0.0
        %452 = vmatpush1.msra.mxu0 0.0
        %453 = vmatprep.subr.mxu0 0.0
        %454 = vmatpush1.msra.mxu0 0.0
        %455 = vmatprep.subr.mxu0 0.0
        %456 = vmatpush1.msra.mxu0 0.0
        %457 = vmatprep.subr.mxu0 0.0
        %458 = vmatpush1.msra.mxu0 0.0
        %459 = vmatprep.subr.mxu0 0.0
        %460 = vmatpush1.msra.mxu0 0.0
        %461 = vmatprep.subr.mxu0 0.0
        %462 = vmatpush1.msra.mxu0 0.0
        %463 = vmatprep.subr.mxu0 0.0
        %464 = vmatpush1.msra.mxu0 0.0
        %465 = vmatprep.subr.mxu0 0.0
        %466 = vmatpush1.msra.mxu0 0.0
        %467 = vmatprep.subr.mxu0 0.0
        %468 = vmatpush1.msra.mxu0 0.0
        %469 = vmatprep.subr.mxu0 0.0
        %470 = vmatpush1.msra.mxu0 0.0
        %471 = vmatprep.subr.mxu0 0.0
        %472 = vmatpush1.msra.mxu0 0.0
        %473 = vmatprep.mubr.f32.mxu0 0.0
        %474 = vmatmul.mubr.f32.gmra.mrb[0].mxu0 %v407
        %v475 = vpop.f32.mrb[0].mxu0
        %v476 = vadd.f32 %v403, %v475
        %v477 = vpop.f32.mrb[0].mxu0
        %478 = vdwg.mxu0
        %v479 = vmax.f32 %v476, 0.0
        %v480 = vld [vmem:[%s5] sm:$0xff]
        %482 = vset.pattern.permute.xlu0 0
        %483 = vperm.xlu0 %482, %v480
        %v484 = vpop.permute.xlu0 %483
        %v486 = vmul.f32 %v479, %v484
        %v487 = vrot.slane %v486, 4
        %v488 = vadd.f32 %v486, %v487
        %v489 = vrot.slane %v488, 2
        %v490 = vadd.f32 %v488, %v489
        %v491 = vrot.slane %v490, 1
        %v492 = vadd.f32 %v490, %v491
        %s493 = sld [smem:[#allocation2]]
        %v494 = vstv %s493
        %v495 = vadd.f32 %v492, %v494
        %496 = vst [vmem:[%s295] sm:$0x1] %v495
        %s497 = sand.u32 %s185, 1
        %s498 = scalar_lea.sflag [#allocation5], %s497
        %s499 = sand.u32 %s185, 1
        %s500 = scalar_lea.vmem [#allocation6], %s499
        // Predicated region
        $region53: #{tpu_custom_call.1} parent=47 // pred_check
          %p501 = pneg %p195
        $region54: #{tpu_custom_call.1} parent=47 // pred_check_branch
          %503 = sbr.rel (%p501) target = $region56
        $region55: #{tpu_custom_call.1} parent=47 // pred_region
          %s505 = ssub.s32 16, 16
          %506 = vsyncadd %s498, %s505
          %s507 = smul.addr %s25, 16
          %s508 = scalar_lea.hbm %s7, %s507
          %s510 = sshll.u32 %s500, 4
          %s511 = int_to_ptr.vmem [resolvable:$true] %s510
          %513 = dma.vmem_to_hbm [thread:$0]  %s511, 16, %s508, %s498
        $region56: #{tpu_custom_call.1} parent=47 // pred_fallthru
          _
      $region48: #{tpu_custom_call.1} parent=5 // pred_fallthru
        _
      %p514 = scmp.le.s32.totalorder 2, %s20
      // Predicated region
      $region57: #{tpu_custom_call.1} parent=5 // pred_check
        %p515 = pneg %p514
      $region58: #{tpu_custom_call.1} parent=5 // pred_check_branch
        %517 = sbr.rel (%p515) target = $region60
      $region59: #{tpu_custom_call.1} parent=5 // pred_region
        %s518 = ssub.s32 %s20, 2
        // Predicated region
        $region61: #{tpu_custom_call.1} parent=59 // pred_check
          %p519 = pneg %p201
        $region62: #{tpu_custom_call.1} parent=59 // pred_check_branch
          %521 = sbr.rel (%p519) target = $region64
        $region63: #{tpu_custom_call.1} parent=59 // pred_region
          %s522 = sand.u32 %s186, 1
          %s523 = scalar_lea.sflag [#allocation5], %s522
          %s524 = sand.u32 %s186, 1
          %s525 = scalar_lea.vmem [#allocation6], %s524
          %526 = dma.done %s523, 16
        $region64: #{tpu_custom_call.1} parent=59 // pred_fallthru
          _
      $region60: #{tpu_custom_call.1} parent=5 // pred_fallthru
        _
    $region6: #{tpu_custom_call.1} parent=1 // loop_footer
      %s24 = sadd.s32 1, %s20
    $region7: #{tpu_custom_call.1} parent=1 // loop_footer_branch
      %19 = sbr.rel target = $region3
    $region8: #{tpu_custom_call.1} parent=1 // loop_exit
      _
    %527 = vsyncpa [#allocation4], 1
    %s528 = scalar_lea.sflag [#allocation4], 1
    %529 = vsyncpa %s528, 1
    %530 = vsyncpa [#allocation5], 1
    %s531 = scalar_lea.sflag [#allocation5], 1
    %532 = vsyncpa %s531, 1

</llo_original>
